<compile_context>
chip_gen: v7x
topology: tpu7x:2x2x1
jax: 0.10.0
libtpu: 0.0.40
codegen_flags: <defaults>
</compile_context>

<pallas_src>
import functools

import jax
import jax.numpy as jnp
from jax.experimental import pallas as pl
from jax.experimental.pallas import tpu as pltpu


def _round_up(x, m):
    return (x + m - 1) // m * m


def _apply_out_activation(x, activation):
    if activation == "relu":
        return jnp.maximum(x, 0.0)
    if activation == "sigmoid":
        return jax.nn.sigmoid(x)
    if activation == "tanh":
        return jnp.tanh(x)
    if activation == "leakyrelu":
        # nn.LeakyReLU() default slope (0.01) on the *output* activation —
        # intentionally different from the 0.1 hidden-layer slope, matching
        # the PyTorch module.
        return jnp.maximum(x, jnp.float32(0.01) * x)
    return x  # 'linear' / unrecognized -> identity


# ----------------------------- Pallas kernel --------------------------------

def _ffgen_kernel(z_ref, w_in_ref, b_in_ref, wh_ref, bh_ref, w_out_ref,
                  b_out_ref, o_ref, *, num_layers, negative_slope, activation):
    cdt = w_in_ref.dtype                       # MXU input dtype (bf16)
    slope = jnp.float32(negative_slope)

    # Input projection: (bm, latent) @ (latent, H) -> f32 (bm, H)
    h = jnp.dot(z_ref[...].astype(cdt), w_in_ref[...],
                preferred_element_type=jnp.float32)
    h = h + b_in_ref[...]                      # (1, H) f32 broadcast over rows
    h = jnp.maximum(h, slope * h)              # LeakyReLU(0.1), 0 < slope < 1

    # Hidden stack (small static trip count -> unrolled at trace time).
    for l in range(num_layers):
        h = jnp.dot(h.astype(cdt), wh_ref[l],
                    preferred_element_type=jnp.float32)
        h = h + bh_ref[l]                      # (1, H)
        h = jnp.maximum(h, slope * h)

    # Output projection, lane-dense (bm, out_pad) + output activation.
    out = jnp.dot(h.astype(cdt), w_out_ref[...],
                  preferred_element_type=jnp.float32)
    out = out + b_out_ref[...]                 # (1, out_pad)
    o_ref[...] = _apply_out_activation(out, activation).astype(o_ref.dtype)


# ------------------------------ Host wrapper ---------------------------------

def init_ffgen_params(key, latent_dim, channels, seq_len, hidden_dim=256,
                      num_layers=4, weight_dtype=jnp.bfloat16):
    """PyTorch-nn.Linear-style init (uniform(-1/sqrt(fan_in), 1/sqrt(fan_in))).

    Weights are stored in `weight_dtype` (bf16 -> native MXU throughput, half
    the weight DMA/VMEM footprint); biases stay f32 for the elementwise path.
    The output projection is zero-padded up to a multiple of 128 lanes.
    """
    out_dim = channels * seq_len
    out_pad = _round_up(out_dim, 128)
    keys = jax.random.split(key, 2 * (num_layers + 2))

    def linear(kw, kb, fan_in, fan_out):
        bound = 1.0 / (fan_in ** 0.5)
        w = jax.random.uniform(kw, (fan_in, fan_out), jnp.float32, -bound, bound)
        b = jax.random.uniform(kb, (fan_out,), jnp.float32, -bound, bound)
        return w, b

    w_in, b_in = linear(keys[0], keys[1], latent_dim, hidden_dim)
    whs, bhs = [], []
    for l in range(num_layers):
        w, b = linear(keys[2 + 2 * l], keys[3 + 2 * l], hidden_dim, hidden_dim)
        whs.append(w)
        bhs.append(b)
    w_out, b_out = linear(keys[2 + 2 * num_layers], keys[3 + 2 * num_layers],
                          hidden_dim, out_dim)
    if out_pad != out_dim:
        w_out = jnp.pad(w_out, ((0, 0), (0, out_pad - out_dim)))
        b_out = jnp.pad(b_out, ((0, out_pad - out_dim),))

    return dict(
        w_in=w_in.astype(weight_dtype),
        b_in=b_in.reshape(1, hidden_dim),
        wh=jnp.stack(whs).astype(weight_dtype),                 # (L, H, H) bf16
        bh=jnp.stack(bhs).reshape(num_layers, 1, hidden_dim),   # (L, 1, H) f32
        w_out=w_out.astype(weight_dtype),                       # (H, out_pad)
        b_out=b_out.reshape(1, out_pad),
    )


def ff_generator(z, params, *, channels, seq_len, negative_slope=0.1,
                 activation="tanh", block_b=512):
    """z: (B, latent_dim). Returns (B, seq_len, channels)."""
    B, latent_dim = z.shape
    hidden_dim = params["w_in"].shape[1]
    num_layers = int(params["wh"].shape[0])
    out_dim = channels * seq_len
    out_pad = params["w_out"].shape[1]
    dtype = z.dtype

    # Batch tile: once B >= 16, give the grid >= 2 steps so v7x's two
    # TensorCores both get work; small batches run as a single block; large
    # batches are capped at block_b rows per step.
    if B > block_b:
        bm = block_b
    elif B >= 16:
        bm = min(block_b, _round_up(pl.cdiv(B, 2), 8))
    else:
        bm = B
    grid = (pl.cdiv(B, bm),)   # partial trailing block is masked by Pallas

    # Rough VMEM budget: resident weights/biases + double-buffered io blocks
    # + f32 intermediates. Raise the scoped limit for big tiles, but stay
    # comfortably under v7x's 64 MiB physical VMEM.
    wdt = jnp.dtype(params["w_in"].dtype).itemsize
    w_bytes = (latent_dim * hidden_dim + num_layers * hidden_dim * hidden_dim
               + hidden_dim * out_pad) * wdt
    b_bytes = ((num_layers + 1) * hidden_dim + out_pad) * 4
    io_bytes = bm * (latent_dim + out_pad) * jnp.dtype(dtype).itemsize
    act_bytes = 4 * bm * max(hidden_dim, out_pad) * 4
    est = 2 * (w_bytes + b_bytes + io_bytes) + act_bytes
    vmem_limit = int(min(max(2 * est, 32 * 2**20), 48 * 2**20))

    kernel = functools.partial(_ffgen_kernel, num_layers=num_layers,
                               negative_slope=float(negative_slope),
                               activation=activation)

    out_flat = pl.pallas_call(
        kernel,
        out_shape=jax.ShapeDtypeStruct((B, out_pad), dtype),
        grid_spec=pltpu.PrefetchScalarGridSpec(
            num_scalar_prefetch=0,
            grid=grid,
            in_specs=[
                pl.BlockSpec((bm, latent_dim), lambda i: (i, 0)),
                # Constant index maps: the pipeliner keeps these weight/bias
                # blocks resident in VMEM (no per-step re-DMA).
                pl.BlockSpec((latent_dim, hidden_dim), lambda i: (0, 0)),
                pl.BlockSpec((1, hidden_dim), lambda i: (0, 0)),
                pl.BlockSpec((num_layers, hidden_dim, hidden_dim),
                             lambda i: (0, 0, 0)),
                pl.BlockSpec((num_layers, 1, hidden_dim), lambda i: (0, 0, 0)),
                pl.BlockSpec((hidden_dim, out_pad), lambda i: (0, 0)),
                pl.BlockSpec((1, out_pad), lambda i: (0, 0)),
            ],
            out_specs=pl.BlockSpec((bm, out_pad), lambda i: (i, 0)),
        ),
        compiler_params=pltpu.CompilerParams(
            dimension_semantics=("parallel",),
            vmem_limit_bytes=vmem_limit),
    )(z, params["w_in"], params["b_in"], params["wh"], params["bh"],
      params["w_out"], params["b_out"])

    if out_pad != out_dim:
        out_flat = out_flat[:, :out_dim]
    # Final reshape mirrors torch `.reshape(-1, seq_len, channels)`.
    return out_flat.reshape(-1, seq_len, channels)


# ------------------------------ Pure-JAX reference ---------------------------

def ff_generator_ref(z, params, *, channels, seq_len, negative_slope=0.1,
                     activation="tanh"):
    out_dim = channels * seq_len
    h = z @ params["w_in"].astype(jnp.float32) + params["b_in"]
    h = jnp.maximum(h, negative_slope * h)
    for l in range(params["wh"].shape[0]):
        h = h @ params["wh"][l].astype(jnp.float32) + params["bh"][l]
        h = jnp.maximum(h, negative_slope * h)
    out = h @ params["w_out"].astype(jnp.float32) + params["b_out"]
    out = _apply_out_activation(out, activation)
    return out[:, :out_dim].reshape(-1, seq_len, channels)


# ---------------------------------- main --------------------------------------

if __name__ == "__main__":
    # Small shapes consistent with the module:
    #   latent_dim=16, hidden_dim=256 (module default), num_layers=4 (default),
    #   channels=4, seq_len=32 -> output feature dim = 128 (already lane-dense).
    B, LATENT, HIDDEN, LAYERS, CHANNELS, SEQ = 8, 16, 256, 4, 4, 32

    root = jax.random.PRNGKey(0)
    k_z, k_p = jax.random.split(root)
    z = jax.random.normal(k_z, (B, LATENT), dtype=jnp.float32)
    params = init_ffgen_params(k_p, LATENT, CHANNELS, SEQ,
                               hidden_dim=HIDDEN, num_layers=LAYERS)

    out = ff_generator(z, params, channels=CHANNELS, seq_len=SEQ)
    out = jax.block_until_ready(out)

    ref = ff_generator_ref(z, params, channels=CHANNELS, seq_len=SEQ)

    assert out.shape == (B, SEQ, CHANNELS), out.shape
    assert bool(jnp.all(jnp.isfinite(out)))
    # bf16 MXU inputs vs f32 XLA reference -> modest tolerance; outputs are
    # tanh-bounded so absolute tolerance is meaningful.
    assert jnp.allclose(out, ref, atol=3e-2, rtol=3e-2), \
        float(jnp.max(jnp.abs(out - ref)))

    print("KERNEL_OK")
</pallas_src>

<mosaic_0001>
module attributes {stable_mosaic.version = 11 : i64} {
  func.func @_ffgen_kernel(%arg0: i32, %arg1: memref<8x16xf32, #tpu.memory_space<vmem>>, %arg2: memref<16x256xbf16, #tpu.memory_space<vmem>>, %arg3: memref<1x256xf32, #tpu.memory_space<vmem>>, %arg4: memref<4x256x256xbf16, #tpu.memory_space<vmem>>, %arg5: memref<4x1x256xf32, #tpu.memory_space<vmem>>, %arg6: memref<256x128xbf16, #tpu.memory_space<vmem>>, %arg7: memref<1x128xf32, #tpu.memory_space<vmem>>, %arg8: memref<8x128xf32, #tpu.memory_space<vmem>>) attributes {dimension_semantics = [#tpu.dimension_semantics<parallel>], iteration_bounds = array<i64: 1>, scalar_prefetch = 0 : i64, scratch_operands = 0 : i64, tpu.core_type = #tpu.core_type<tc>, window_params = [{transform_indices = @transform_0, window_bounds = array<i64: 8, 16>}, {pipeline_mode = #tpu.pipeline_mode<synchronous>, transform_indices = @transform_1, window_bounds = array<i64: 16, 256>}, {pipeline_mode = #tpu.pipeline_mode<synchronous>, transform_indices = @transform_2, window_bounds = array<i64: 1, 256>}, {pipeline_mode = #tpu.pipeline_mode<synchronous>, transform_indices = @transform_3, window_bounds = array<i64: 4, 256, 256>}, {pipeline_mode = #tpu.pipeline_mode<synchronous>, transform_indices = @transform_4, window_bounds = array<i64: 4, 1, 256>}, {pipeline_mode = #tpu.pipeline_mode<synchronous>, transform_indices = @transform_5, window_bounds = array<i64: 256, 128>}, {pipeline_mode = #tpu.pipeline_mode<synchronous>, transform_indices = @transform_6, window_bounds = array<i64: 1, 128>}, {transform_indices = @transform_7, window_bounds = array<i64: 8, 128>}]} {
    %c0 = arith.constant 0 : index
    %c0_0 = arith.constant 0 : index
    %0 = vector.load %arg1[%c0, %c0_0] : memref<8x16xf32, #tpu.memory_space<vmem>>, vector<8x16xf32>
    %1 = arith.truncf %0 : vector<8x16xf32> to vector<8x16xbf16>
    %c0_1 = arith.constant 0 : index
    %c0_2 = arith.constant 0 : index
    %2 = vector.load %arg2[%c0_1, %c0_2] : memref<16x256xbf16, #tpu.memory_space<vmem>>, vector<16x256xbf16>
    %cst = arith.constant dense<0.000000e+00> : vector<8x256xf32>
    %3 = tpu.matmul %1, %2, %cst {dimension_numbers = #tpu.dot_dimension_numbers<[1], [0], [0], [1], [0, 0, 1, 1], [], []>} : vector<8x16xbf16>, vector<16x256xbf16>, vector<8x256xf32> -> vector<8x256xf32>
    %c0_3 = arith.constant 0 : index
    %c0_4 = arith.constant 0 : index
    %4 = vector.load %arg3[%c0_3, %c0_4] : memref<1x256xf32, #tpu.memory_space<vmem>>, vector<1x256xf32>
    %5 = vector.broadcast %4 : vector<1x256xf32> to vector<8x256xf32>
    %6 = arith.addf %3, %5 : vector<8x256xf32>
    %cst_5 = arith.constant 1.000000e-01 : f32
    %7 = vector.broadcast %cst_5 : f32 to vector<8x256xf32>
    %8 = arith.mulf %7, %6 : vector<8x256xf32>
    %9 = arith.maximumf %6, %8 : vector<8x256xf32>
    %10 = arith.truncf %9 : vector<8x256xf32> to vector<8x256xbf16>
    %c0_6 = arith.constant 0 : index
    %c0_7 = arith.constant 0 : index
    %c0_8 = arith.constant 0 : index
    %11 = vector.load %arg4[%c0_6, %c0_7, %c0_8] : memref<4x256x256xbf16, #tpu.memory_space<vmem>>, vector<1x256x256xbf16>
    %12 = vector.shape_cast %11 : vector<1x256x256xbf16> to vector<256x256xbf16>
    %cst_9 = arith.constant dense<0.000000e+00> : vector<8x256xf32>
    %13 = tpu.matmul %10, %12, %cst_9 {dimension_numbers = #tpu.dot_dimension_numbers<[1], [0], [0], [1], [0, 0, 1, 1], [], []>} : vector<8x256xbf16>, vector<256x256xbf16>, vector<8x256xf32> -> vector<8x256xf32>
    %c0_10 = arith.constant 0 : index
    %c0_11 = arith.constant 0 : index
    %c0_12 = arith.constant 0 : index
    %14 = vector.load %arg5[%c0_10, %c0_11, %c0_12] : memref<4x1x256xf32, #tpu.memory_space<vmem>>, vector<1x1x256xf32>
    %15 = vector.shape_cast %14 : vector<1x1x256xf32> to vector<1x256xf32>
    %16 = vector.broadcast %15 : vector<1x256xf32> to vector<8x256xf32>
    %17 = arith.addf %13, %16 : vector<8x256xf32>
    %cst_13 = arith.constant 1.000000e-01 : f32
    %18 = vector.broadcast %cst_13 : f32 to vector<8x256xf32>
    %19 = arith.mulf %18, %17 : vector<8x256xf32>
    %20 = arith.maximumf %17, %19 : vector<8x256xf32>
    %21 = arith.truncf %20 : vector<8x256xf32> to vector<8x256xbf16>
    %c1 = arith.constant 1 : index
    %c0_14 = arith.constant 0 : index
    %c0_15 = arith.constant 0 : index
    %22 = vector.load %arg4[%c1, %c0_14, %c0_15] : memref<4x256x256xbf16, #tpu.memory_space<vmem>>, vector<1x256x256xbf16>
    %23 = vector.shape_cast %22 : vector<1x256x256xbf16> to vector<256x256xbf16>
    %cst_16 = arith.constant dense<0.000000e+00> : vector<8x256xf32>
    %24 = tpu.matmul %21, %23, %cst_16 {dimension_numbers = #tpu.dot_dimension_numbers<[1], [0], [0], [1], [0, 0, 1, 1], [], []>} : vector<8x256xbf16>, vector<256x256xbf16>, vector<8x256xf32> -> vector<8x256xf32>
    %c1_17 = arith.constant 1 : index
    %c0_18 = arith.constant 0 : index
    %c0_19 = arith.constant 0 : index
    %25 = vector.load %arg5[%c1_17, %c0_18, %c0_19] : memref<4x1x256xf32, #tpu.memory_space<vmem>>, vector<1x1x256xf32>
    %26 = vector.shape_cast %25 : vector<1x1x256xf32> to vector<1x256xf32>
    %27 = vector.broadcast %26 : vector<1x256xf32> to vector<8x256xf32>
    %28 = arith.addf %24, %27 : vector<8x256xf32>
    %cst_20 = arith.constant 1.000000e-01 : f32
    %29 = vector.broadcast %cst_20 : f32 to vector<8x256xf32>
    %30 = arith.mulf %29, %28 : vector<8x256xf32>
    %31 = arith.maximumf %28, %30 : vector<8x256xf32>
    %32 = arith.truncf %31 : vector<8x256xf32> to vector<8x256xbf16>
    %c2 = arith.constant 2 : index
    %c0_21 = arith.constant 0 : index
    %c0_22 = arith.constant 0 : index
    %33 = vector.load %arg4[%c2, %c0_21, %c0_22] : memref<4x256x256xbf16, #tpu.memory_space<vmem>>, vector<1x256x256xbf16>
    %34 = vector.shape_cast %33 : vector<1x256x256xbf16> to vector<256x256xbf16>
    %cst_23 = arith.constant dense<0.000000e+00> : vector<8x256xf32>
    %35 = tpu.matmul %32, %34, %cst_23 {dimension_numbers = #tpu.dot_dimension_numbers<[1], [0], [0], [1], [0, 0, 1, 1], [], []>} : vector<8x256xbf16>, vector<256x256xbf16>, vector<8x256xf32> -> vector<8x256xf32>
    %c2_24 = arith.constant 2 : index
    %c0_25 = arith.constant 0 : index
    %c0_26 = arith.constant 0 : index
    %36 = vector.load %arg5[%c2_24, %c0_25, %c0_26] : memref<4x1x256xf32, #tpu.memory_space<vmem>>, vector<1x1x256xf32>
    %37 = vector.shape_cast %36 : vector<1x1x256xf32> to vector<1x256xf32>
    %38 = vector.broadcast %37 : vector<1x256xf32> to vector<8x256xf32>
    %39 = arith.addf %35, %38 : vector<8x256xf32>
    %cst_27 = arith.constant 1.000000e-01 : f32
    %40 = vector.broadcast %cst_27 : f32 to vector<8x256xf32>
    %41 = arith.mulf %40, %39 : vector<8x256xf32>
    %42 = arith.maximumf %39, %41 : vector<8x256xf32>
    %43 = arith.truncf %42 : vector<8x256xf32> to vector<8x256xbf16>
    %c3 = arith.constant 3 : index
    %c0_28 = arith.constant 0 : index
    %c0_29 = arith.constant 0 : index
    %44 = vector.load %arg4[%c3, %c0_28, %c0_29] : memref<4x256x256xbf16, #tpu.memory_space<vmem>>, vector<1x256x256xbf16>
    %45 = vector.shape_cast %44 : vector<1x256x256xbf16> to vector<256x256xbf16>
    %cst_30 = arith.constant dense<0.000000e+00> : vector<8x256xf32>
    %46 = tpu.matmul %43, %45, %cst_30 {dimension_numbers = #tpu.dot_dimension_numbers<[1], [0], [0], [1], [0, 0, 1, 1], [], []>} : vector<8x256xbf16>, vector<256x256xbf16>, vector<8x256xf32> -> vector<8x256xf32>
    %c3_31 = arith.constant 3 : index
    %c0_32 = arith.constant 0 : index
    %c0_33 = arith.constant 0 : index
    %47 = vector.load %arg5[%c3_31, %c0_32, %c0_33] : memref<4x1x256xf32, #tpu.memory_space<vmem>>, vector<1x1x256xf32>
    %48 = vector.shape_cast %47 : vector<1x1x256xf32> to vector<1x256xf32>
    %49 = vector.broadcast %48 : vector<1x256xf32> to vector<8x256xf32>
    %50 = arith.addf %46, %49 : vector<8x256xf32>
    %cst_34 = arith.constant 1.000000e-01 : f32
    %51 = vector.broadcast %cst_34 : f32 to vector<8x256xf32>
    %52 = arith.mulf %51, %50 : vector<8x256xf32>
    %53 = arith.maximumf %50, %52 : vector<8x256xf32>
    %54 = arith.truncf %53 : vector<8x256xf32> to vector<8x256xbf16>
    %c0_35 = arith.constant 0 : index
    %c0_36 = arith.constant 0 : index
    %55 = vector.load %arg6[%c0_35, %c0_36] : memref<256x128xbf16, #tpu.memory_space<vmem>>, vector<256x128xbf16>
    %cst_37 = arith.constant dense<0.000000e+00> : vector<8x128xf32>
    %56 = tpu.matmul %54, %55, %cst_37 {dimension_numbers = #tpu.dot_dimension_numbers<[1], [0], [0], [1], [0, 0, 1, 1], [], []>} : vector<8x256xbf16>, vector<256x128xbf16>, vector<8x128xf32> -> vector<8x128xf32>
    %c0_38 = arith.constant 0 : index
    %c0_39 = arith.constant 0 : index
    %57 = vector.load %arg7[%c0_38, %c0_39] : memref<1x128xf32, #tpu.memory_space<vmem>>, vector<1x128xf32>
    %58 = vector.broadcast %57 : vector<1x128xf32> to vector<8x128xf32>
    %59 = arith.addf %56, %58 : vector<8x128xf32>
    %60 = math.tanh %59 : vector<8x128xf32>
    %c0_40 = arith.constant 0 : index
    %c0_41 = arith.constant 0 : index
    %61 = vector.load %arg8[%c0_40, %c0_41] : memref<8x128xf32, #tpu.memory_space<vmem>>, vector<8x128xf32>
    tpu.vector_store %arg8[%c0_40, %c0_41], %60 {strides = array<i32>} : memref<8x128xf32, #tpu.memory_space<vmem>>, vector<8x128xf32>,
    return
  }
  func.func @transform_0(%arg0: i32) -> (i32, i32) {
    %c0_i32 = arith.constant 0 : i32
    %c0_i32_0 = arith.constant 0 : i32
    return %arg0, %c0_i32 : i32, i32
  }
  func.func @transform_1(%arg0: i32) -> (i32, i32) {
    %c0_i32 = arith.constant 0 : i32
    %c0_i32_0 = arith.constant 0 : i32
    %c0_i32_1 = arith.constant 0 : i32
    return %c0_i32, %c0_i32_0 : i32, i32
  }
  func.func @transform_2(%arg0: i32) -> (i32, i32) {
    %c0_i32 = arith.constant 0 : i32
    %c0_i32_0 = arith.constant 0 : i32
    %c0_i32_1 = arith.constant 0 : i32
    return %c0_i32, %c0_i32_0 : i32, i32
  }
  func.func @transform_3(%arg0: i32) -> (i32, i32, i32) {
    %c0_i32 = arith.constant 0 : i32
    %c0_i32_0 = arith.constant 0 : i32
    %c0_i32_1 = arith.constant 0 : i32
    %c0_i32_2 = arith.constant 0 : i32
    return %c0_i32, %c0_i32_0, %c0_i32_1 : i32, i32, i32
  }
  func.func @transform_4(%arg0: i32) -> (i32, i32, i32) {
    %c0_i32 = arith.constant 0 : i32
    %c0_i32_0 = arith.constant 0 : i32
    %c0_i32_1 = arith.constant 0 : i32
    %c0_i32_2 = arith.constant 0 : i32
    return %c0_i32, %c0_i32_0, %c0_i32_1 : i32, i32, i32
  }
  func.func @transform_5(%arg0: i32) -> (i32, i32) {
    %c0_i32 = arith.constant 0 : i32
    %c0_i32_0 = arith.constant 0 : i32
    %c0_i32_1 = arith.constant 0 : i32
    return %c0_i32, %c0_i32_0 : i32, i32
  }
  func.func @transform_6(%arg0: i32) -> (i32, i32) {
    %c0_i32 = arith.constant 0 : i32
    %c0_i32_0 = arith.constant 0 : i32
    %c0_i32_1 = arith.constant 0 : i32
    return %c0_i32, %c0_i32_0 : i32, i32
  }
  func.func @transform_7(%arg0: i32) -> (i32, i32) {
    %c0_i32 = arith.constant 0 : i32
    %c0_i32_0 = arith.constant 0 : i32
    return %arg0, %c0_i32 : i32, i32
  }
}

</mosaic_0001>

<llo_original>
// kernel: tpu_custom_call.1
$region0: #{tpu_custom_call.1}
  #allocation0 [shape = 'u32[]', space=smem, size = 0x4, offset = 0x4, fixed_abs, tag = 'smem constant byte address 0x4 - core index']
  #allocation1 [shape = 'u32[144,128]{1,0:T(1,128)}', space=vmem, size = 0x12000, scoped, tag = 'internal scratch']
  %s0 = inlined_call_operand.hbm [shape: f32[8,16], index: 0, kind: input, shape index: {}]
  %s1 = inlined_call_operand.hbm [shape: bf16[16,256], index: 1, kind: input, shape index: {}]
  %s2 = inlined_call_operand.vmem [shape: f32[1,256], index: 2, kind: input, shape index: {}]
  %s3 = inlined_call_operand.hbm [shape: bf16[4,256,256], index: 3, kind: input, shape index: {}]
  %s4 = inlined_call_operand.vmem [shape: f32[4,1,256], index: 4, kind: input, shape index: {}]
  %s5 = inlined_call_operand.hbm [shape: bf16[256,128], index: 5, kind: input, shape index: {}]
  %s6 = inlined_call_operand.vmem [shape: f32[1,128], index: 6, kind: input, shape index: {}]
  %s7 = inlined_call_operand.hbm [shape: f32[8,128], index: 7, kind: output, shape index: {}]
  %s8 = sld [smem:[#allocation0]]
  $region54: #{tpu_custom_call.1} parent=0
    _
  %s10 = ssub.s32 1, %s8
  %s11 = scalar_select 0, %s10, %s8
  $region1: #{tpu_custom_call.1} parent=0
    #allocation2 [shape = 'u8[4096]{0}', space=vmem, size = 0x1000, scoped, tag = 'input window, operand 0, single buffered']
    #allocation3 [shape = 's32[1]{0}', space=sflag, size = 0x4, scoped, tag = 'scoped memory for tpu_custom_call.1']
    #allocation4 [shape = 's32[1]{0}', space=sflag, size = 0x4, scoped, tag = 'scoped memory for tpu_custom_call.1']
    #allocation5 [shape = 'u8[8192]{0}', space=vmem, size = 0x2000, scoped, tag = 'input window, operand 1, single buffered']
    #allocation6 [shape = 's32[1]{0}', space=sflag, size = 0x4, scoped, tag = 'scoped memory for tpu_custom_call.1']
    #allocation7 [shape = 'u8[524288]{0}', space=vmem, size = 0x80000, scoped, tag = 'input window, operand 3, single buffered']
    #allocation8 [shape = 'u8[65536]{0}', space=vmem, size = 0x10000, scoped, tag = 'input window, operand 5, single buffered']
    #allocation9 [shape = 's32[1]{0}', space=sflag, size = 0x4, scoped, tag = 'scoped memory for tpu_custom_call.1']
    #allocation10 [shape = 'u8[4096]{0}', space=vmem, size = 0x1000, scoped, tag = 'output window, operand 0, single buffered']
    %12 = vsyncpa [#allocation3], 0
    %13 = vsyncpa [#allocation6], 0
    %14 = vsyncpa [#allocation9], 0
    %15 = vsyncpa [#allocation4], 0
    // Predicated region
    $region2: #{tpu_custom_call.1} parent=1 // pred_check
      _
    $region3: #{tpu_custom_call.1} parent=1 // pred_check_branch
      %17 = sbr.rel (0) target = $region5
    $region4: #{tpu_custom_call.1} parent=1 // pred_region
      %s19 = ssub.s32 128, 128
      %20 = vsyncadd [#allocation3], %s19
      %s22 = sshll.u32 [#allocation2], 4
      %s23 = int_to_ptr.vmem [resolvable:$true] %s22
      %25 = dma.hbm_to_vmem [thread:$0]  %s0, 128, %s23, [#allocation3]
    $region5: #{tpu_custom_call.1} parent=1 // pred_fallthru
      _
    // Predicated region
    $region6: #{tpu_custom_call.1} parent=1 // pred_check
      _
    $region7: #{tpu_custom_call.1} parent=1 // pred_check_branch
      %27 = sbr.rel (0) target = $region9
    $region8: #{tpu_custom_call.1} parent=1 // pred_region
      %s29 = ssub.s32 256, 256
      %30 = vsyncadd [#allocation6], %s29
      %s31 = sshll.u32 [#allocation5], 4
      %s32 = int_to_ptr.vmem [resolvable:$true] %s31
      %37 = dma.hbm_to_vmem [thread:$0]  %s1, 256, %s32, [#allocation6], 128, 128, 8
    $region9: #{tpu_custom_call.1} parent=1 // pred_fallthru
      _
    // Predicated region
    $region10: #{tpu_custom_call.1} parent=1 // pred_check
      _
    $region11: #{tpu_custom_call.1} parent=1 // pred_check_branch
      %39 = sbr.rel (0) target = $region13
    $region12: #{tpu_custom_call.1} parent=1 // pred_region
      _
    $region13: #{tpu_custom_call.1} parent=1 // pred_fallthru
      _
    // Predicated region
    $region14: #{tpu_custom_call.1} parent=1 // pred_check
      _
    $region15: #{tpu_custom_call.1} parent=1 // pred_check_branch
      %41 = sbr.rel (0) target = $region17
    $region16: #{tpu_custom_call.1} parent=1 // pred_region
      %s43 = ssub.s32 16384, 16384
      %44 = vsyncadd [#allocation6], %s43
      %s45 = sshll.u32 [#allocation7], 4
      %s46 = int_to_ptr.vmem [resolvable:$true] %s45
      %51 = dma.hbm_to_vmem [thread:$0]  %s3, 16384, %s46, [#allocation6], 128, 128, 8
    $region17: #{tpu_custom_call.1} parent=1 // pred_fallthru
      _
    // Predicated region
    $region18: #{tpu_custom_call.1} parent=1 // pred_check
      _
    $region19: #{tpu_custom_call.1} parent=1 // pred_check_branch
      %53 = sbr.rel (0) target = $region21
    $region20: #{tpu_custom_call.1} parent=1 // pred_region
      _
    $region21: #{tpu_custom_call.1} parent=1 // pred_fallthru
      _
    // Predicated region
    $region22: #{tpu_custom_call.1} parent=1 // pred_check
      _
    $region23: #{tpu_custom_call.1} parent=1 // pred_check_branch
      %55 = sbr.rel (0) target = $region25
    $region24: #{tpu_custom_call.1} parent=1 // pred_region
      %s57 = ssub.s32 2048, 2048
      %58 = vsyncadd [#allocation9], %s57
      %s59 = sshll.u32 [#allocation8], 4
      %s60 = int_to_ptr.vmem [resolvable:$true] %s59
      %65 = dma.hbm_to_vmem [thread:$0]  %s5, 2048, %s60, [#allocation9], 64, 64, 4
    $region25: #{tpu_custom_call.1} parent=1 // pred_fallthru
      _
    // Predicated region
    $region26: #{tpu_custom_call.1} parent=1 // pred_check
      _
    $region27: #{tpu_custom_call.1} parent=1 // pred_check_branch
      %67 = sbr.rel (0) target = $region29
    $region28: #{tpu_custom_call.1} parent=1 // pred_region
      _
    $region29: #{tpu_custom_call.1} parent=1 // pred_fallthru
      _
    // Predicated region
    $region30: #{tpu_custom_call.1} parent=1 // pred_check
      _
    $region31: #{tpu_custom_call.1} parent=1 // pred_check_branch
      %69 = sbr.rel (0) target = $region33
    $region32: #{tpu_custom_call.1} parent=1 // pred_region
      %70 = dma.done [#allocation3], 128
    $region33: #{tpu_custom_call.1} parent=1 // pred_fallthru
      _
    // Predicated region
    $region34: #{tpu_custom_call.1} parent=1 // pred_check
      _
    $region35: #{tpu_custom_call.1} parent=1 // pred_check_branch
      %72 = sbr.rel (0) target = $region37
    $region36: #{tpu_custom_call.1} parent=1 // pred_region
      %73 = dma.done [#allocation6], 256
    $region37: #{tpu_custom_call.1} parent=1 // pred_fallthru
      _
    // Predicated region
    $region38: #{tpu_custom_call.1} parent=1 // pred_check
      _
    $region39: #{tpu_custom_call.1} parent=1 // pred_check_branch
      %75 = sbr.rel (0) target = $region41
    $region40: #{tpu_custom_call.1} parent=1 // pred_region
      %76 = dma.done [#allocation6], 16384
    $region41: #{tpu_custom_call.1} parent=1 // pred_fallthru
      _
    // Predicated region
    $region42: #{tpu_custom_call.1} parent=1 // pred_check
      _
    $region43: #{tpu_custom_call.1} parent=1 // pred_check_branch
      %78 = sbr.rel (0) target = $region45
    $region44: #{tpu_custom_call.1} parent=1 // pred_region
      %79 = dma.done [#allocation9], 2048
    $region45: #{tpu_custom_call.1} parent=1 // pred_fallthru
      _
    %v81 = vld [vmem:[#allocation2] sm:$0xff]
    %v82 = vpack.c.bf16 %v81, %v81
    %v83 = vld [vmem:[#allocation5] sm:$0xff]
    %v84 = vld [vmem:[#allocation5 + $0x8] sm:$0xff]
    %v85 = vld [vmem:[%s2] sm:$0x3]
    %v87 = vlaneseq
    %v88 = vshrl.u32 %v87, 7
    %v89 = vsub.s32 0, %v88
    %v90 = vrot.slane %v85, %v89
    %v91 = vlaneseq
    %v92 = vshrl.u32 %v91, 7
    %v93 = vsub.s32 1, %v92
    %v94 = vrot.slane %v85, %v93
    %v99 = vunpack.c.l.b16 %v83
    %v100 = vunpack.c.h.b16 %v83
    %v101 = vunpack.c.l.b16 %v84
    %v102 = vunpack.c.h.b16 %v84
    %v103 = vpack.c.b16 %v101, %v99
    %v104 = vpack.c.b16 %v102, %v100
    %vm107 = vcmask 130048
    %v109 = vsel %vm107, %v82, 0
    %111 = vmatprep.subr.bf16.mxu0 %v104
    %112 = vmatpush1.bf16.msra.mxu0 %v103
    %113 = vmatprep.subr.bf16.mxu0 0
    %114 = vmatpush1.bf16.msra.mxu0 0
    %115 = vmatprep.subr.bf16.mxu0 0
    %116 = vmatpush1.bf16.msra.mxu0 0
    %117 = vmatprep.subr.bf16.mxu0 0
    %118 = vmatpush1.bf16.msra.mxu0 0
    %119 = vmatprep.subr.bf16.mxu0 0
    %120 = vmatpush1.bf16.msra.mxu0 0
    %121 = vmatprep.subr.bf16.mxu0 0
    %122 = vmatpush1.bf16.msra.mxu0 0
    %123 = vmatprep.subr.bf16.mxu0 0
    %124 = vmatpush1.bf16.msra.mxu0 0
    %125 = vmatprep.subr.bf16.mxu0 0
    %126 = vmatpush1.bf16.msra.mxu0 0
    %127 = vmatprep.subr.bf16.mxu0 0
    %128 = vmatpush1.bf16.msra.mxu0 0
    %129 = vmatprep.subr.bf16.mxu0 0
    %130 = vmatpush1.bf16.msra.mxu0 0
    %131 = vmatprep.subr.bf16.mxu0 0
    %132 = vmatpush1.bf16.msra.mxu0 0
    %133 = vmatprep.subr.bf16.mxu0 0
    %134 = vmatpush1.bf16.msra.mxu0 0
    %135 = vmatprep.subr.bf16.mxu0 0
    %136 = vmatpush1.bf16.msra.mxu0 0
    %137 = vmatprep.subr.bf16.mxu0 0
    %138 = vmatpush1.bf16.msra.mxu0 0
    %139 = vmatprep.subr.bf16.mxu0 0
    %140 = vmatpush1.bf16.msra.mxu0 0
    %141 = vmatprep.subr.bf16.mxu0 0
    %142 = vmatpush1.bf16.msra.mxu0 0
    %143 = vmatprep.mubr.bf16.mxu0 0
    %144 = vmatmul.mubr.bf16.gmra.mrb[0].mxu0 %v109
    %v145 = vpop.f32.mrb[0].mxu0
    %v146 = vadd.f32 %v90, %v145
    %v147 = vpop.f32.mrb[0].mxu0
    %v148 = vadd.f32 %v94, %v147
    %v149 = vpop.f32.mrb[0].mxu0
    %v150 = vpop.f32.mrb[0].mxu0
    %151 = vdwg.mxu0
    %v152 = vmul.f32 %v146, 0.1
    %v153 = vmul.f32 %v148, 0.1
    %v154 = vmax.f32 %v146, %v152
    %v155 = vmax.f32 %v148, %v153
    %v156 = vpack.c.bf16 %v154, %v154
    %v157 = vpack.c.bf16 %v155, %v155
    %v158 = vld [vmem:[#allocation7] sm:$0xff]
    %v159 = vld [vmem:[#allocation7 + $0x8] sm:$0xff]
    %v160 = vld [vmem:[#allocation7 + $0x10] sm:$0xff]
    %v161 = vld [vmem:[#allocation7 + $0x18] sm:$0xff]
    %v162 = vld [vmem:[#allocation7 + $0x20] sm:$0xff]
    %v163 = vld [vmem:[#allocation7 + $0x28] sm:$0xff]
    %v164 = vld [vmem:[#allocation7 + $0x30] sm:$0xff]
    %v165 = vld [vmem:[#allocation7 + $0x38] sm:$0xff]
    %v166 = vld [vmem:[#allocation7 + $0x40] sm:$0xff]
    %v167 = vld [vmem:[#allocation7 + $0x48] sm:$0xff]
    %v168 = vld [vmem:[#allocation7 + $0x50] sm:$0xff]
    %v169 = vld [vmem:[#allocation7 + $0x58] sm:$0xff]
    %v170 = vld [vmem:[#allocation7 + $0x60] sm:$0xff]
    %v171 = vld [vmem:[#allocation7 + $0x68] sm:$0xff]
    %v172 = vld [vmem:[#allocation7 + $0x70] sm:$0xff]
    %v173 = vld [vmem:[#allocation7 + $0x78] sm:$0xff]
    %v174 = vld [vmem:[#allocation7 + $0x80] sm:$0xff]
    %v175 = vld [vmem:[#allocation7 + $0x88] sm:$0xff]
    %v176 = vld [vmem:[#allocation7 + $0x90] sm:$0xff]
    %v177 = vld [vmem:[#allocation7 + $0x98] sm:$0xff]
    %v178 = vld [vmem:[#allocation7 + $0xa0] sm:$0xff]
    %v179 = vld [vmem:[#allocation7 + $0xa8] sm:$0xff]
    %v180 = vld [vmem:[#allocation7 + $0xb0] sm:$0xff]
    %v181 = vld [vmem:[#allocation7 + $0xb8] sm:$0xff]
    %v182 = vld [vmem:[#allocation7 + $0xc0] sm:$0xff]
    %v183 = vld [vmem:[#allocation7 + $0xc8] sm:$0xff]
    %v184 = vld [vmem:[#allocation7 + $0xd0] sm:$0xff]
    %v185 = vld [vmem:[#allocation7 + $0xd8] sm:$0xff]
    %v186 = vld [vmem:[#allocation7 + $0xe0] sm:$0xff]
    %v187 = vld [vmem:[#allocation7 + $0xe8] sm:$0xff]
    %v188 = vld [vmem:[#allocation7 + $0xf0] sm:$0xff]
    %v189 = vld [vmem:[#allocation7 + $0xf8] sm:$0xff]
    %v190 = vld [vmem:[%s4] sm:$0x3]
    %v192 = vlaneseq
    %v193 = vshrl.u32 %v192, 7
    %v194 = vsub.s32 0, %v193
    %v195 = vrot.slane %v190, %v194
    %v196 = vlaneseq
    %v197 = vshrl.u32 %v196, 7
    %v198 = vsub.s32 1, %v197
    %v199 = vrot.slane %v190, %v198
    %v234 = vunpack.c.l.b16 %v158
    %v235 = vunpack.c.h.b16 %v158
    %v236 = vunpack.c.l.b16 %v159
    %v237 = vunpack.c.h.b16 %v159
    %v238 = vunpack.c.l.b16 %v160
    %v239 = vunpack.c.h.b16 %v160
    %v240 = vunpack.c.l.b16 %v161
    %v241 = vunpack.c.h.b16 %v161
    %v242 = vunpack.c.l.b16 %v162
    %v243 = vunpack.c.h.b16 %v162
    %v244 = vunpack.c.l.b16 %v163
    %v245 = vunpack.c.h.b16 %v163
    %v246 = vunpack.c.l.b16 %v164
    %v247 = vunpack.c.h.b16 %v164
    %v248 = vunpack.c.l.b16 %v165
    %v249 = vunpack.c.h.b16 %v165
    %v250 = vunpack.c.l.b16 %v166
    %v251 = vunpack.c.h.b16 %v166
    %v252 = vunpack.c.l.b16 %v167
    %v253 = vunpack.c.h.b16 %v167
    %v254 = vunpack.c.l.b16 %v168
    %v255 = vunpack.c.h.b16 %v168
    %v256 = vunpack.c.l.b16 %v169
    %v257 = vunpack.c.h.b16 %v169
    %v258 = vunpack.c.l.b16 %v170
    %v259 = vunpack.c.h.b16 %v170
    %v260 = vunpack.c.l.b16 %v171
    %v261 = vunpack.c.h.b16 %v171
    %v262 = vunpack.c.l.b16 %v172
    %v263 = vunpack.c.h.b16 %v172
    %v264 = vunpack.c.l.b16 %v173
    %v265 = vunpack.c.h.b16 %v173
    %v266 = vunpack.c.l.b16 %v174
    %v267 = vunpack.c.h.b16 %v174
    %v268 = vunpack.c.l.b16 %v175
    %v269 = vunpack.c.h.b16 %v175
    %v270 = vunpack.c.l.b16 %v176
    %v271 = vunpack.c.h.b16 %v176
    %v272 = vunpack.c.l.b16 %v177
    %v273 = vunpack.c.h.b16 %v177
    %v274 = vunpack.c.l.b16 %v178
    %v275 = vunpack.c.h.b16 %v178
    %v276 = vunpack.c.l.b16 %v179
    %v277 = vunpack.c.h.b16 %v179
    %v278 = vunpack.c.l.b16 %v180
    %v279 = vunpack.c.h.b16 %v180
    %v280 = vunpack.c.l.b16 %v181
    %v281 = vunpack.c.h.b16 %v181
    %v282 = vunpack.c.l.b16 %v182
    %v283 = vunpack.c.h.b16 %v182
    %v284 = vunpack.c.l.b16 %v183
    %v285 = vunpack.c.h.b16 %v183
    %v286 = vunpack.c.l.b16 %v184
    %v287 = vunpack.c.h.b16 %v184
    %v288 = vunpack.c.l.b16 %v185
    %v289 = vunpack.c.h.b16 %v185
    %v290 = vunpack.c.l.b16 %v186
    %v291 = vunpack.c.h.b16 %v186
    %v292 = vunpack.c.l.b16 %v187
    %v293 = vunpack.c.h.b16 %v187
    %v294 = vunpack.c.l.b16 %v188
    %v295 = vunpack.c.h.b16 %v188
    %v296 = vunpack.c.l.b16 %v189
    %v297 = vunpack.c.h.b16 %v189
    %v298 = vpack.c.b16 %v236, %v234
    %v299 = vpack.c.b16 %v237, %v235
    %v300 = vpack.c.b16 %v240, %v238
    %v301 = vpack.c.b16 %v241, %v239
    %v302 = vpack.c.b16 %v244, %v242
    %v303 = vpack.c.b16 %v245, %v243
    %v304 = vpack.c.b16 %v248, %v246
    %v305 = vpack.c.b16 %v249, %v247
    %v306 = vpack.c.b16 %v252, %v250
    %v307 = vpack.c.b16 %v253, %v251
    %v308 = vpack.c.b16 %v256, %v254
    %v309 = vpack.c.b16 %v257, %v255
    %v310 = vpack.c.b16 %v260, %v258
    %v311 = vpack.c.b16 %v261, %v259
    %v312 = vpack.c.b16 %v264, %v262
    %v313 = vpack.c.b16 %v265, %v263
    %v314 = vpack.c.b16 %v268, %v266
    %v315 = vpack.c.b16 %v269, %v267
    %v316 = vpack.c.b16 %v272, %v270
    %v317 = vpack.c.b16 %v273, %v271
    %v318 = vpack.c.b16 %v276, %v274
    %v319 = vpack.c.b16 %v277, %v275
    %v320 = vpack.c.b16 %v280, %v278
    %v321 = vpack.c.b16 %v281, %v279
    %v322 = vpack.c.b16 %v284, %v282
    %v323 = vpack.c.b16 %v285, %v283
    %v324 = vpack.c.b16 %v288, %v286
    %v325 = vpack.c.b16 %v289, %v287
    %v326 = vpack.c.b16 %v292, %v290
    %v327 = vpack.c.b16 %v293, %v291
    %v328 = vpack.c.b16 %v296, %v294
    %v329 = vpack.c.b16 %v297, %v295
    %362 = vmatprep.subr.bf16.mxu0 %v299
    %363 = vmatpush1.bf16.msra.mxu0 %v298
    %364 = vmatprep.subr.bf16.mxu0 %v301
    %365 = vmatpush1.bf16.msra.mxu0 %v300
    %366 = vmatprep.subr.bf16.mxu0 %v303
    %367 = vmatpush1.bf16.msra.mxu0 %v302
    %368 = vmatprep.subr.bf16.mxu0 %v305
    %369 = vmatpush1.bf16.msra.mxu0 %v304
    %370 = vmatprep.subr.bf16.mxu0 %v307
    %371 = vmatpush1.bf16.msra.mxu0 %v306
    %372 = vmatprep.subr.bf16.mxu0 %v309
    %373 = vmatpush1.bf16.msra.mxu0 %v308
    %374 = vmatprep.subr.bf16.mxu0 %v311
    %375 = vmatpush1.bf16.msra.mxu0 %v310
    %376 = vmatprep.subr.bf16.mxu0 %v313
    %377 = vmatpush1.bf16.msra.mxu0 %v312
    %378 = vmatprep.subr.bf16.mxu0 %v315
    %379 = vmatpush1.bf16.msra.mxu0 %v314
    %380 = vmatprep.subr.bf16.mxu0 %v317
    %381 = vmatpush1.bf16.msra.mxu0 %v316
    %382 = vmatprep.subr.bf16.mxu0 %v319
    %383 = vmatpush1.bf16.msra.mxu0 %v318
    %384 = vmatprep.subr.bf16.mxu0 %v321
    %385 = vmatpush1.bf16.msra.mxu0 %v320
    %386 = vmatprep.subr.bf16.mxu0 %v323
    %387 = vmatpush1.bf16.msra.mxu0 %v322
    %388 = vmatprep.subr.bf16.mxu0 %v325
    %389 = vmatpush1.bf16.msra.mxu0 %v324
    %390 = vmatprep.subr.bf16.mxu0 %v327
    %391 = vmatpush1.bf16.msra.mxu0 %v326
    %392 = vmatprep.subr.bf16.mxu0 %v329
    %393 = vmatpush1.bf16.msra.mxu0 %v328
    %394 = vmatprep.mubr.bf16.mxu0 %v157
    %395 = vmatmul.mubr.bf16.gmra.mrb[0].mxu0 %v156
    %v396 = vpop.f32.mrb[0].mxu0
    %v397 = vadd.f32 %v195, %v396
    %v398 = vpop.f32.mrb[0].mxu0
    %v399 = vadd.f32 %v199, %v398
    %v400 = vpop.f32.mrb[0].mxu0
    %v401 = vpop.f32.mrb[0].mxu0
    %402 = vdwg.mxu0
    %v403 = vmul.f32 %v397, 0.1
    %v404 = vmul.f32 %v399, 0.1
    %v405 = vmax.f32 %v397, %v403
    %v406 = vmax.f32 %v399, %v404
    %v407 = vpack.c.bf16 %v405, %v405
    %v408 = vpack.c.bf16 %v406, %v406
    %s409 = scalar_lea.vmem [#allocation7], 256
    %v410 = vld [vmem:[%s409] sm:$0xff]
    %v411 = vld [vmem:[%s409 + $0x8] sm:$0xff]
    %v412 = vld [vmem:[%s409 + $0x10] sm:$0xff]
    %v413 = vld [vmem:[%s409 + $0x18] sm:$0xff]
    %v414 = vld [vmem:[%s409 + $0x20] sm:$0xff]
    %v415 = vld [vmem:[%s409 + $0x28] sm:$0xff]
    %v416 = vld [vmem:[%s409 + $0x30] sm:$0xff]
    %v417 = vld [vmem:[%s409 + $0x38] sm:$0xff]
    %v418 = vld [vmem:[%s409 + $0x40] sm:$0xff]
    %v419 = vld [vmem:[%s409 + $0x48] sm:$0xff]
    %v420 = vld [vmem:[%s409 + $0x50] sm:$0xff]
    %v421 = vld [vmem:[%s409 + $0x58] sm:$0xff]
    %v422 = vld [vmem:[%s409 + $0x60] sm:$0xff]
    %v423 = vld [vmem:[%s409 + $0x68] sm:$0xff]
    %v424 = vld [vmem:[%s409 + $0x70] sm:$0xff]
    %v425 = vld [vmem:[%s409 + $0x78] sm:$0xff]
    %v426 = vld [vmem:[%s409 + $0x80] sm:$0xff]
    %v427 = vld [vmem:[%s409 + $0x88] sm:$0xff]
    %v428 = vld [vmem:[%s409 + $0x90] sm:$0xff]
    %v429 = vld [vmem:[%s409 + $0x98] sm:$0xff]
    %v430 = vld [vmem:[%s409 + $0xa0] sm:$0xff]
    %v431 = vld [vmem:[%s409 + $0xa8] sm:$0xff]
    %v432 = vld [vmem:[%s409 + $0xb0] sm:$0xff]
    %v433 = vld [vmem:[%s409 + $0xb8] sm:$0xff]
    %v434 = vld [vmem:[%s409 + $0xc0] sm:$0xff]
    %v435 = vld [vmem:[%s409 + $0xc8] sm:$0xff]
    %v436 = vld [vmem:[%s409 + $0xd0] sm:$0xff]
    %v437 = vld [vmem:[%s409 + $0xd8] sm:$0xff]
    %v438 = vld [vmem:[%s409 + $0xe0] sm:$0xff]
    %v439 = vld [vmem:[%s409 + $0xe8] sm:$0xff]
    %v440 = vld [vmem:[%s409 + $0xf0] sm:$0xff]
    %v441 = vld [vmem:[%s409 + $0xf8] sm:$0xff]
    %s442 = scalar_lea.vmem %s4, 2
    %v443 = vld [vmem:[%s442] sm:$0x3]
    %v445 = vlaneseq
    %v446 = vshrl.u32 %v445, 7
    %v447 = vsub.s32 0, %v446
    %v448 = vrot.slane %v443, %v447
    %v449 = vlaneseq
    %v450 = vshrl.u32 %v449, 7
    %v451 = vsub.s32 1, %v450
    %v452 = vrot.slane %v443, %v451
    %v487 = vunpack.c.l.b16 %v410
    %v488 = vunpack.c.h.b16 %v410
    %v489 = vunpack.c.l.b16 %v411
    %v490 = vunpack.c.h.b16 %v411
    %v491 = vunpack.c.l.b16 %v412
    %v492 = vunpack.c.h.b16 %v412
    %v493 = vunpack.c.l.b16 %v413
    %v494 = vunpack.c.h.b16 %v413
    %v495 = vunpack.c.l.b16 %v414
    %v496 = vunpack.c.h.b16 %v414
    %v497 = vunpack.c.l.b16 %v415
    %v498 = vunpack.c.h.b16 %v415
    %v499 = vunpack.c.l.b16 %v416
    %v500 = vunpack.c.h.b16 %v416
    %v501 = vunpack.c.l.b16 %v417
    %v502 = vunpack.c.h.b16 %v417
    %v503 = vunpack.c.l.b16 %v418
    %v504 = vunpack.c.h.b16 %v418
    %v505 = vunpack.c.l.b16 %v419
    %v506 = vunpack.c.h.b16 %v419
    %v507 = vunpack.c.l.b16 %v420
    %v508 = vunpack.c.h.b16 %v420
    %v509 = vunpack.c.l.b16 %v421
    %v510 = vunpack.c.h.b16 %v421
    %v511 = vunpack.c.l.b16 %v422
    %v512 = vunpack.c.h.b16 %v422
    %v513 = vunpack.c.l.b16 %v423
    %v514 = vunpack.c.h.b16 %v423
    %v515 = vunpack.c.l.b16 %v424
    %v516 = vunpack.c.h.b16 %v424
    %v517 = vunpack.c.l.b16 %v425
    %v518 = vunpack.c.h.b16 %v425
    %v519 = vunpack.c.l.b16 %v426
    %v520 = vunpack.c.h.b16 %v426
    %v521 = vunpack.c.l.b16 %v427
    %v522 = vunpack.c.h.b16 %v427
    %v523 = vunpack.c.l.b16 %v428
    %v524 = vunpack.c.h.b16 %v428
    %v525 = vunpack.c.l.b16 %v429
    %v526 = vunpack.c.h.b16 %v429
    %v527 = vunpack.c.l.b16 %v430
    %v528 = vunpack.c.h.b16 %v430
    %v529 = vunpack.c.l.b16 %v431
    %v530 = vunpack.c.h.b16 %v431
    %v531 = vunpack.c.l.b16 %v432
    %v532 = vunpack.c.h.b16 %v432
    %v533 = vunpack.c.l.b16 %v433
    %v534 = vunpack.c.h.b16 %v433
    %v535 = vunpack.c.l.b16 %v434
    %v536 = vunpack.c.h.b16 %v434
    %v537 = vunpack.c.l.b16 %v435
    %v538 = vunpack.c.h.b16 %v435
    %v539 = vunpack.c.l.b16 %v436
    %v540 = vunpack.c.h.b16 %v436
    %v541 = vunpack.c.l.b16 %v437
    %v542 = vunpack.c.h.b16 %v437
    %v543 = vunpack.c.l.b16 %v438
    %v544 = vunpack.c.h.b16 %v438
    %v545 = vunpack.c.l.b16 %v439
    %v546 = vunpack.c.h.b16 %v439
    %v547 = vunpack.c.l.b16 %v440
    %v548 = vunpack.c.h.b16 %v440
    %v549 = vunpack.c.l.b16 %v441
    %v550 = vunpack.c.h.b16 %v441
    %v551 = vpack.c.b16 %v489, %v487
    %v552 = vpack.c.b16 %v490, %v488
    %v553 = vpack.c.b16 %v493, %v491
    %v554 = vpack.c.b16 %v494, %v492
    %v555 = vpack.c.b16 %v497, %v495
    %v556 = vpack.c.b16 %v498, %v496
    %v557 = vpack.c.b16 %v501, %v499
    %v558 = vpack.c.b16 %v502, %v500
    %v559 = vpack.c.b16 %v505, %v503
    %v560 = vpack.c.b16 %v506, %v504
    %v561 = vpack.c.b16 %v509, %v507
    %v562 = vpack.c.b16 %v510, %v508
    %v563 = vpack.c.b16 %v513, %v511
    %v564 = vpack.c.b16 %v514, %v512
    %v565 = vpack.c.b16 %v517, %v515
    %v566 = vpack.c.b16 %v518, %v516
    %v567 = vpack.c.b16 %v521, %v519
    %v568 = vpack.c.b16 %v522, %v520
    %v569 = vpack.c.b16 %v525, %v523
    %v570 = vpack.c.b16 %v526, %v524
    %v571 = vpack.c.b16 %v529, %v527
    %v572 = vpack.c.b16 %v530, %v528
    %v573 = vpack.c.b16 %v533, %v531
    %v574 = vpack.c.b16 %v534, %v532
    %v575 = vpack.c.b16 %v537, %v535
    %v576 = vpack.c.b16 %v538, %v536
    %v577 = vpack.c.b16 %v541, %v539
    %v578 = vpack.c.b16 %v542, %v540
    %v579 = vpack.c.b16 %v545, %v543
    %v580 = vpack.c.b16 %v546, %v544
    %v581 = vpack.c.b16 %v549, %v547
    %v582 = vpack.c.b16 %v550, %v548
    %615 = vmatprep.subr.bf16.mxu0 %v552
    %616 = vmatpush1.bf16.msra.mxu0 %v551
    %617 = vmatprep.subr.bf16.mxu0 %v554
    %618 = vmatpush1.bf16.msra.mxu0 %v553
    %619 = vmatprep.subr.bf16.mxu0 %v556
    %620 = vmatpush1.bf16.msra.mxu0 %v555
    %621 = vmatprep.subr.bf16.mxu0 %v558
    %622 = vmatpush1.bf16.msra.mxu0 %v557
    %623 = vmatprep.subr.bf16.mxu0 %v560
    %624 = vmatpush1.bf16.msra.mxu0 %v559
    %625 = vmatprep.subr.bf16.mxu0 %v562
    %626 = vmatpush1.bf16.msra.mxu0 %v561
    %627 = vmatprep.subr.bf16.mxu0 %v564
    %628 = vmatpush1.bf16.msra.mxu0 %v563
    %629 = vmatprep.subr.bf16.mxu0 %v566
    %630 = vmatpush1.bf16.msra.mxu0 %v565
    %631 = vmatprep.subr.bf16.mxu0 %v568
    %632 = vmatpush1.bf16.msra.mxu0 %v567
    %633 = vmatprep.subr.bf16.mxu0 %v570
    %634 = vmatpush1.bf16.msra.mxu0 %v569
    %635 = vmatprep.subr.bf16.mxu0 %v572
    %636 = vmatpush1.bf16.msra.mxu0 %v571
    %637 = vmatprep.subr.bf16.mxu0 %v574
    %638 = vmatpush1.bf16.msra.mxu0 %v573
    %639 = vmatprep.subr.bf16.mxu0 %v576
    %640 = vmatpush1.bf16.msra.mxu0 %v575
    %641 = vmatprep.subr.bf16.mxu0 %v578
    %642 = vmatpush1.bf16.msra.mxu0 %v577
    %643 = vmatprep.subr.bf16.mxu0 %v580
    %644 = vmatpush1.bf16.msra.mxu0 %v579
    %645 = vmatprep.subr.bf16.mxu0 %v582
    %646 = vmatpush1.bf16.msra.mxu0 %v581
    %647 = vmatprep.mubr.bf16.mxu0 %v408
    %648 = vmatmul.mubr.bf16.gmra.mrb[0].mxu0 %v407
    %v649 = vpop.f32.mrb[0].mxu0
    %v650 = vadd.f32 %v448, %v649
    %v651 = vpop.f32.mrb[0].mxu0
    %v652 = vadd.f32 %v452, %v651
    %v653 = vpop.f32.mrb[0].mxu0
    %v654 = vpop.f32.mrb[0].mxu0
    %655 = vdwg.mxu0
    %v656 = vmul.f32 %v650, 0.1
    %v657 = vmul.f32 %v652, 0.1
    %v658 = vmax.f32 %v650, %v656
    %v659 = vmax.f32 %v652, %v657
    %v660 = vpack.c.bf16 %v658, %v658
    %v661 = vpack.c.bf16 %v659, %v659
    %s662 = scalar_lea.vmem [#allocation7], 512
    %v663 = vld [vmem:[%s662] sm:$0xff]
    %v664 = vld [vmem:[%s662 + $0x8] sm:$0xff]
    %v665 = vld [vmem:[%s662 + $0x10] sm:$0xff]
    %v666 = vld [vmem:[%s662 + $0x18] sm:$0xff]
    %v667 = vld [vmem:[%s662 + $0x20] sm:$0xff]
    %v668 = vld [vmem:[%s662 + $0x28] sm:$0xff]
    %v669 = vld [vmem:[%s662 + $0x30] sm:$0xff]
    %v670 = vld [vmem:[%s662 + $0x38] sm:$0xff]
    %v671 = vld [vmem:[%s662 + $0x40] sm:$0xff]
    %v672 = vld [vmem:[%s662 + $0x48] sm:$0xff]
    %v673 = vld [vmem:[%s662 + $0x50] sm:$0xff]
    %v674 = vld [vmem:[%s662 + $0x58] sm:$0xff]
    %v675 = vld [vmem:[%s662 + $0x60] sm:$0xff]
    %v676 = vld [vmem:[%s662 + $0x68] sm:$0xff]
    %v677 = vld [vmem:[%s662 + $0x70] sm:$0xff]
    %v678 = vld [vmem:[%s662 + $0x78] sm:$0xff]
    %v679 = vld [vmem:[%s662 + $0x80] sm:$0xff]
    %v680 = vld [vmem:[%s662 + $0x88] sm:$0xff]
    %v681 = vld [vmem:[%s662 + $0x90] sm:$0xff]
    %v682 = vld [vmem:[%s662 + $0x98] sm:$0xff]
    %v683 = vld [vmem:[%s662 + $0xa0] sm:$0xff]
    %v684 = vld [vmem:[%s662 + $0xa8] sm:$0xff]
    %v685 = vld [vmem:[%s662 + $0xb0] sm:$0xff]
    %v686 = vld [vmem:[%s662 + $0xb8] sm:$0xff]
    %v687 = vld [vmem:[%s662 + $0xc0] sm:$0xff]
    %v688 = vld [vmem:[%s662 + $0xc8] sm:$0xff]
    %v689 = vld [vmem:[%s662 + $0xd0] sm:$0xff]
    %v690 = vld [vmem:[%s662 + $0xd8] sm:$0xff]
    %v691 = vld [vmem:[%s662 + $0xe0] sm:$0xff]
    %v692 = vld [vmem:[%s662 + $0xe8] sm:$0xff]
    %v693 = vld [vmem:[%s662 + $0xf0] sm:$0xff]
    %v694 = vld [vmem:[%s662 + $0xf8] sm:$0xff]
    %s695 = scalar_lea.vmem %s4, 4
    %v696 = vld [vmem:[%s695] sm:$0x3]
    %v698 = vlaneseq
    %v699 = vshrl.u32 %v698, 7
    %v700 = vsub.s32 0, %v699
    %v701 = vrot.slane %v696, %v700
    %v702 = vlaneseq
    %v703 = vshrl.u32 %v702, 7
    %v704 = vsub.s32 1, %v703
    %v705 = vrot.slane %v696, %v704
    %v740 = vunpack.c.l.b16 %v663
    %v741 = vunpack.c.h.b16 %v663
    %v742 = vunpack.c.l.b16 %v664
    %v743 = vunpack.c.h.b16 %v664
    %v744 = vunpack.c.l.b16 %v665
    %v745 = vunpack.c.h.b16 %v665
    %v746 = vunpack.c.l.b16 %v666
    %v747 = vunpack.c.h.b16 %v666
    %v748 = vunpack.c.l.b16 %v667
    %v749 = vunpack.c.h.b16 %v667
    %v750 = vunpack.c.l.b16 %v668
    %v751 = vunpack.c.h.b16 %v668
    %v752 = vunpack.c.l.b16 %v669
    %v753 = vunpack.c.h.b16 %v669
    %v754 = vunpack.c.l.b16 %v670
    %v755 = vunpack.c.h.b16 %v670
    %v756 = vunpack.c.l.b16 %v671
    %v757 = vunpack.c.h.b16 %v671
    %v758 = vunpack.c.l.b16 %v672
    %v759 = vunpack.c.h.b16 %v672
    %v760 = vunpack.c.l.b16 %v673
    %v761 = vunpack.c.h.b16 %v673
    %v762 = vunpack.c.l.b16 %v674
    %v763 = vunpack.c.h.b16 %v674
    %v764 = vunpack.c.l.b16 %v675
    %v765 = vunpack.c.h.b16 %v675
    %v766 = vunpack.c.l.b16 %v676
    %v767 = vunpack.c.h.b16 %v676
    %v768 = vunpack.c.l.b16 %v677
    %v769 = vunpack.c.h.b16 %v677
    %v770 = vunpack.c.l.b16 %v678
    %v771 = vunpack.c.h.b16 %v678
    %v772 = vunpack.c.l.b16 %v679
    %v773 = vunpack.c.h.b16 %v679
    %v774 = vunpack.c.l.b16 %v680
    %v775 = vunpack.c.h.b16 %v680
    %v776 = vunpack.c.l.b16 %v681
    %v777 = vunpack.c.h.b16 %v681
    %v778 = vunpack.c.l.b16 %v682
    %v779 = vunpack.c.h.b16 %v682
    %v780 = vunpack.c.l.b16 %v683
    %v781 = vunpack.c.h.b16 %v683
    %v782 = vunpack.c.l.b16 %v684
    %v783 = vunpack.c.h.b16 %v684
    %v784 = vunpack.c.l.b16 %v685
    %v785 = vunpack.c.h.b16 %v685
    %v786 = vunpack.c.l.b16 %v686
    %v787 = vunpack.c.h.b16 %v686
    %v788 = vunpack.c.l.b16 %v687
    %v789 = vunpack.c.h.b16 %v687
    %v790 = vunpack.c.l.b16 %v688
    %v791 = vunpack.c.h.b16 %v688
    %v792 = vunpack.c.l.b16 %v689
    %v793 = vunpack.c.h.b16 %v689
    %v794 = vunpack.c.l.b16 %v690
    %v795 = vunpack.c.h.b16 %v690
    %v796 = vunpack.c.l.b16 %v691
    %v797 = vunpack.c.h.b16 %v691
    %v798 = vunpack.c.l.b16 %v692
    %v799 = vunpack.c.h.b16 %v692
    %v800 = vunpack.c.l.b16 %v693
    %v801 = vunpack.c.h.b16 %v693
    %v802 = vunpack.c.l.b16 %v694
    %v803 = vunpack.c.h.b16 %v694
    %v804 = vpack.c.b16 %v742, %v740
    %v805 = vpack.c.b16 %v743, %v741
    %v806 = vpack.c.b16 %v746, %v744
    %v807 = vpack.c.b16 %v747, %v745
    %v808 = vpack.c.b16 %v750, %v748
    %v809 = vpack.c.b16 %v751, %v749
    %v810 = vpack.c.b16 %v754, %v752
    %v811 = vpack.c.b16 %v755, %v753
    %v812 = vpack.c.b16 %v758, %v756
    %v813 = vpack.c.b16 %v759, %v757
    %v814 = vpack.c.b16 %v762, %v760
    %v815 = vpack.c.b16 %v763, %v761
    %v816 = vpack.c.b16 %v766, %v764
    %v817 = vpack.c.b16 %v767, %v765
    %v818 = vpack.c.b16 %v770, %v768
    %v819 = vpack.c.b16 %v771, %v769
    %v820 = vpack.c.b16 %v774, %v772
    %v821 = vpack.c.b16 %v775, %v773
    %v822 = vpack.c.b16 %v778, %v776
    %v823 = vpack.c.b16 %v779, %v777
    %v824 = vpack.c.b16 %v782, %v780
    %v825 = vpack.c.b16 %v783, %v781
    %v826 = vpack.c.b16 %v786, %v784
    %v827 = vpack.c.b16 %v787, %v785
    %v828 = vpack.c.b16 %v790, %v788
    %v829 = vpack.c.b16 %v791, %v789
    %v830 = vpack.c.b16 %v794, %v792
    %v831 = vpack.c.b16 %v795, %v793
    %v832 = vpack.c.b16 %v798, %v796
    %v833 = vpack.c.b16 %v799, %v797
    %v834 = vpack.c.b16 %v802, %v800
    %v835 = vpack.c.b16 %v803, %v801
    %868 = vmatprep.subr.bf16.mxu0 %v805
    %869 = vmatpush1.bf16.msra.mxu0 %v804
    %870 = vmatprep.subr.bf16.mxu0 %v807
    %871 = vmatpush1.bf16.msra.mxu0 %v806
    %872 = vmatprep.subr.bf16.mxu0 %v809
    %873 = vmatpush1.bf16.msra.mxu0 %v808
    %874 = vmatprep.subr.bf16.mxu0 %v811
    %875 = vmatpush1.bf16.msra.mxu0 %v810
    %876 = vmatprep.subr.bf16.mxu0 %v813
    %877 = vmatpush1.bf16.msra.mxu0 %v812
    %878 = vmatprep.subr.bf16.mxu0 %v815
    %879 = vmatpush1.bf16.msra.mxu0 %v814
    %880 = vmatprep.subr.bf16.mxu0 %v817
    %881 = vmatpush1.bf16.msra.mxu0 %v816
    %882 = vmatprep.subr.bf16.mxu0 %v819
    %883 = vmatpush1.bf16.msra.mxu0 %v818
    %884 = vmatprep.subr.bf16.mxu0 %v821
    %885 = vmatpush1.bf16.msra.mxu0 %v820
    %886 = vmatprep.subr.bf16.mxu0 %v823
    %887 = vmatpush1.bf16.msra.mxu0 %v822
    %888 = vmatprep.subr.bf16.mxu0 %v825
    %889 = vmatpush1.bf16.msra.mxu0 %v824
    %890 = vmatprep.subr.bf16.mxu0 %v827
    %891 = vmatpush1.bf16.msra.mxu0 %v826
    %892 = vmatprep.subr.bf16.mxu0 %v829
    %893 = vmatpush1.bf16.msra.mxu0 %v828
    %894 = vmatprep.subr.bf16.mxu0 %v831
    %895 = vmatpush1.bf16.msra.mxu0 %v830
    %896 = vmatprep.subr.bf16.mxu0 %v833
    %897 = vmatpush1.bf16.msra.mxu0 %v832
    %898 = vmatprep.subr.bf16.mxu0 %v835
    %899 = vmatpush1.bf16.msra.mxu0 %v834
    %900 = vmatprep.mubr.bf16.mxu0 %v661
    %901 = vmatmul.mubr.bf16.gmra.mrb[0].mxu0 %v660
    %v902 = vpop.f32.mrb[0].mxu0
    %v903 = vadd.f32 %v701, %v902
    %v904 = vpop.f32.mrb[0].mxu0
    %v905 = vadd.f32 %v705, %v904
    %v906 = vpop.f32.mrb[0].mxu0
    %v907 = vpop.f32.mrb[0].mxu0
    %908 = vdwg.mxu0
    %v909 = vmul.f32 %v903, 0.1
    %v910 = vmul.f32 %v905, 0.1
    %v911 = vmax.f32 %v903, %v909
    %v912 = vmax.f32 %v905, %v910
    %v913 = vpack.c.bf16 %v911, %v911
    %v914 = vpack.c.bf16 %v912, %v912
    %s915 = scalar_lea.vmem [#allocation7], 768
    %v916 = vld [vmem:[%s915] sm:$0xff]
    %v917 = vld [vmem:[%s915 + $0x8] sm:$0xff]
    %v918 = vld [vmem:[%s915 + $0x10] sm:$0xff]
    %v919 = vld [vmem:[%s915 + $0x18] sm:$0xff]
    %v920 = vld [vmem:[%s915 + $0x20] sm:$0xff]
    %v921 = vld [vmem:[%s915 + $0x28] sm:$0xff]
    %v922 = vld [vmem:[%s915 + $0x30] sm:$0xff]
    %v923 = vld [vmem:[%s915 + $0x38] sm:$0xff]
    %v924 = vld [vmem:[%s915 + $0x40] sm:$0xff]
    %v925 = vld [vmem:[%s915 + $0x48] sm:$0xff]
    %v926 = vld [vmem:[%s915 + $0x50] sm:$0xff]
    %v927 = vld [vmem:[%s915 + $0x58] sm:$0xff]
    %v928 = vld [vmem:[%s915 + $0x60] sm:$0xff]
    %v929 = vld [vmem:[%s915 + $0x68] sm:$0xff]
    %v930 = vld [vmem:[%s915 + $0x70] sm:$0xff]
    %v931 = vld [vmem:[%s915 + $0x78] sm:$0xff]
    %v932 = vld [vmem:[%s915 + $0x80] sm:$0xff]
    %v933 = vld [vmem:[%s915 + $0x88] sm:$0xff]
    %v934 = vld [vmem:[%s915 + $0x90] sm:$0xff]
    %v935 = vld [vmem:[%s915 + $0x98] sm:$0xff]
    %v936 = vld [vmem:[%s915 + $0xa0] sm:$0xff]
    %v937 = vld [vmem:[%s915 + $0xa8] sm:$0xff]
    %v938 = vld [vmem:[%s915 + $0xb0] sm:$0xff]
    %v939 = vld [vmem:[%s915 + $0xb8] sm:$0xff]
    %v940 = vld [vmem:[%s915 + $0xc0] sm:$0xff]
    %v941 = vld [vmem:[%s915 + $0xc8] sm:$0xff]
    %v942 = vld [vmem:[%s915 + $0xd0] sm:$0xff]
    %v943 = vld [vmem:[%s915 + $0xd8] sm:$0xff]
    %v944 = vld [vmem:[%s915 + $0xe0] sm:$0xff]
    %v945 = vld [vmem:[%s915 + $0xe8] sm:$0xff]
    %v946 = vld [vmem:[%s915 + $0xf0] sm:$0xff]
    %v947 = vld [vmem:[%s915 + $0xf8] sm:$0xff]
    %s948 = scalar_lea.vmem %s4, 6
    %v949 = vld [vmem:[%s948] sm:$0x3]
    %v951 = vlaneseq
    %v952 = vshrl.u32 %v951, 7
    %v953 = vsub.s32 0, %v952
    %v954 = vrot.slane %v949, %v953
    %v955 = vlaneseq
    %v956 = vshrl.u32 %v955, 7
    %v957 = vsub.s32 1, %v956
    %v958 = vrot.slane %v949, %v957
    %v993 = vunpack.c.l.b16 %v916
    %v994 = vunpack.c.h.b16 %v916
    %v995 = vunpack.c.l.b16 %v917
    %v996 = vunpack.c.h.b16 %v917
    %v997 = vunpack.c.l.b16 %v918
    %v998 = vunpack.c.h.b16 %v918
    %v999 = vunpack.c.l.b16 %v919
    %v1000 = vunpack.c.h.b16 %v919
    %v1001 = vunpack.c.l.b16 %v920
    %v1002 = vunpack.c.h.b16 %v920
    %v1003 = vunpack.c.l.b16 %v921
    %v1004 = vunpack.c.h.b16 %v921
    %v1005 = vunpack.c.l.b16 %v922
    %v1006 = vunpack.c.h.b16 %v922
    %v1007 = vunpack.c.l.b16 %v923
    %v1008 = vunpack.c.h.b16 %v923
    %v1009 = vunpack.c.l.b16 %v924
    %v1010 = vunpack.c.h.b16 %v924
    %v1011 = vunpack.c.l.b16 %v925
    %v1012 = vunpack.c.h.b16 %v925
    %v1013 = vunpack.c.l.b16 %v926
    %v1014 = vunpack.c.h.b16 %v926
    %v1015 = vunpack.c.l.b16 %v927
    %v1016 = vunpack.c.h.b16 %v927
    %v1017 = vunpack.c.l.b16 %v928
    %v1018 = vunpack.c.h.b16 %v928
    %v1019 = vunpack.c.l.b16 %v929
    %v1020 = vunpack.c.h.b16 %v929
    %v1021 = vunpack.c.l.b16 %v930
    %v1022 = vunpack.c.h.b16 %v930
    %v1023 = vunpack.c.l.b16 %v931
    %v1024 = vunpack.c.h.b16 %v931
    %v1025 = vunpack.c.l.b16 %v932
    %v1026 = vunpack.c.h.b16 %v932
    %v1027 = vunpack.c.l.b16 %v933
    %v1028 = vunpack.c.h.b16 %v933
    %v1029 = vunpack.c.l.b16 %v934
    %v1030 = vunpack.c.h.b16 %v934
    %v1031 = vunpack.c.l.b16 %v935
    %v1032 = vunpack.c.h.b16 %v935
    %v1033 = vunpack.c.l.b16 %v936
    %v1034 = vunpack.c.h.b16 %v936
    %v1035 = vunpack.c.l.b16 %v937
    %v1036 = vunpack.c.h.b16 %v937
    %v1037 = vunpack.c.l.b16 %v938
    %v1038 = vunpack.c.h.b16 %v938
    %v1039 = vunpack.c.l.b16 %v939
    %v1040 = vunpack.c.h.b16 %v939
    %v1041 = vunpack.c.l.b16 %v940
    %v1042 = vunpack.c.h.b16 %v940
    %v1043 = vunpack.c.l.b16 %v941
    %v1044 = vunpack.c.h.b16 %v941
    %v1045 = vunpack.c.l.b16 %v942
    %v1046 = vunpack.c.h.b16 %v942
    %v1047 = vunpack.c.l.b16 %v943
    %v1048 = vunpack.c.h.b16 %v943
    %v1049 = vunpack.c.l.b16 %v944
    %v1050 = vunpack.c.h.b16 %v944
    %v1051 = vunpack.c.l.b16 %v945
    %v1052 = vunpack.c.h.b16 %v945
    %v1053 = vunpack.c.l.b16 %v946
    %v1054 = vunpack.c.h.b16 %v946
    %v1055 = vunpack.c.l.b16 %v947
    %v1056 = vunpack.c.h.b16 %v947
    %v1057 = vpack.c.b16 %v995, %v993
    %v1058 = vpack.c.b16 %v996, %v994
    %v1059 = vpack.c.b16 %v999, %v997
    %v1060 = vpack.c.b16 %v1000, %v998
    %v1061 = vpack.c.b16 %v1003, %v1001
    %v1062 = vpack.c.b16 %v1004, %v1002
    %v1063 = vpack.c.b16 %v1007, %v1005
    %v1064 = vpack.c.b16 %v1008, %v1006
    %v1065 = vpack.c.b16 %v1011, %v1009
    %v1066 = vpack.c.b16 %v1012, %v1010
    %v1067 = vpack.c.b16 %v1015, %v1013
    %v1068 = vpack.c.b16 %v1016, %v1014
    %v1069 = vpack.c.b16 %v1019, %v1017
    %v1070 = vpack.c.b16 %v1020, %v1018
    %v1071 = vpack.c.b16 %v1023, %v1021
    %v1072 = vpack.c.b16 %v1024, %v1022
    %v1073 = vpack.c.b16 %v1027, %v1025
    %v1074 = vpack.c.b16 %v1028, %v1026
    %v1075 = vpack.c.b16 %v1031, %v1029
    %v1076 = vpack.c.b16 %v1032, %v1030
    %v1077 = vpack.c.b16 %v1035, %v1033
    %v1078 = vpack.c.b16 %v1036, %v1034
    %v1079 = vpack.c.b16 %v1039, %v1037
    %v1080 = vpack.c.b16 %v1040, %v1038
    %v1081 = vpack.c.b16 %v1043, %v1041
    %v1082 = vpack.c.b16 %v1044, %v1042
    %v1083 = vpack.c.b16 %v1047, %v1045
    %v1084 = vpack.c.b16 %v1048, %v1046
    %v1085 = vpack.c.b16 %v1051, %v1049
    %v1086 = vpack.c.b16 %v1052, %v1050
    %v1087 = vpack.c.b16 %v1055, %v1053
    %v1088 = vpack.c.b16 %v1056, %v1054
    %1121 = vmatprep.subr.bf16.mxu0 %v1058
    %1122 = vmatpush1.bf16.msra.mxu0 %v1057
    %1123 = vmatprep.subr.bf16.mxu0 %v1060
    %1124 = vmatpush1.bf16.msra.mxu0 %v1059
    %1125 = vmatprep.subr.bf16.mxu0 %v1062
    %1126 = vmatpush1.bf16.msra.mxu0 %v1061
    %1127 = vmatprep.subr.bf16.mxu0 %v1064
    %1128 = vmatpush1.bf16.msra.mxu0 %v1063
    %1129 = vmatprep.subr.bf16.mxu0 %v1066
    %1130 = vmatpush1.bf16.msra.mxu0 %v1065
    %1131 = vmatprep.subr.bf16.mxu0 %v1068
    %1132 = vmatpush1.bf16.msra.mxu0 %v1067
    %1133 = vmatprep.subr.bf16.mxu0 %v1070
    %1134 = vmatpush1.bf16.msra.mxu0 %v1069
    %1135 = vmatprep.subr.bf16.mxu0 %v1072
    %1136 = vmatpush1.bf16.msra.mxu0 %v1071
    %1137 = vmatprep.subr.bf16.mxu0 %v1074
    %1138 = vmatpush1.bf16.msra.mxu0 %v1073
    %1139 = vmatprep.subr.bf16.mxu0 %v1076
    %1140 = vmatpush1.bf16.msra.mxu0 %v1075
    %1141 = vmatprep.subr.bf16.mxu0 %v1078
    %1142 = vmatpush1.bf16.msra.mxu0 %v1077
    %1143 = vmatprep.subr.bf16.mxu0 %v1080
    %1144 = vmatpush1.bf16.msra.mxu0 %v1079
    %1145 = vmatprep.subr.bf16.mxu0 %v1082
    %1146 = vmatpush1.bf16.msra.mxu0 %v1081
    %1147 = vmatprep.subr.bf16.mxu0 %v1084
    %1148 = vmatpush1.bf16.msra.mxu0 %v1083
    %1149 = vmatprep.subr.bf16.mxu0 %v1086
    %1150 = vmatpush1.bf16.msra.mxu0 %v1085
    %1151 = vmatprep.subr.bf16.mxu0 %v1088
    %1152 = vmatpush1.bf16.msra.mxu0 %v1087
    %1153 = vmatprep.mubr.bf16.mxu0 %v914
    %1154 = vmatmul.mubr.bf16.gmra.mrb[0].mxu0 %v913
    %v1155 = vpop.f32.mrb[0].mxu0
    %v1156 = vadd.f32 %v954, %v1155
    %v1157 = vpop.f32.mrb[0].mxu0
    %v1158 = vadd.f32 %v958, %v1157
    %v1159 = vpop.f32.mrb[0].mxu0
    %v1160 = vpop.f32.mrb[0].mxu0
    %1161 = vdwg.mxu0
    %v1162 = vmul.f32 %v1156, 0.1
    %v1163 = vmul.f32 %v1158, 0.1
    %v1164 = vmax.f32 %v1156, %v1162
    %v1165 = vmax.f32 %v1158, %v1163
    %v1166 = vpack.c.bf16 %v1164, %v1164
    %v1167 = vpack.c.bf16 %v1165, %v1165
    %v1168 = vld [vmem:[#allocation8] sm:$0xf]
    %v1169 = vld [vmem:[#allocation8 + $0x4] sm:$0xf]
    %v1170 = vld [vmem:[#allocation8 + $0x8] sm:$0xf]
    %v1171 = vld [vmem:[#allocation8 + $0xc] sm:$0xf]
    %v1172 = vld [vmem:[#allocation8 + $0x10] sm:$0xf]
    %v1173 = vld [vmem:[#allocation8 + $0x14] sm:$0xf]
    %v1174 = vld [vmem:[#allocation8 + $0x18] sm:$0xf]
    %v1175 = vld [vmem:[#allocation8 + $0x1c] sm:$0xf]
    %v1176 = vld [vmem:[#allocation8 + $0x20] sm:$0xf]
    %v1177 = vld [vmem:[#allocation8 + $0x24] sm:$0xf]
    %v1178 = vld [vmem:[#allocation8 + $0x28] sm:$0xf]
    %v1179 = vld [vmem:[#allocation8 + $0x2c] sm:$0xf]
    %v1180 = vld [vmem:[#allocation8 + $0x30] sm:$0xf]
    %v1181 = vld [vmem:[#allocation8 + $0x34] sm:$0xf]
    %v1182 = vld [vmem:[#allocation8 + $0x38] sm:$0xf]
    %v1183 = vld [vmem:[#allocation8 + $0x3c] sm:$0xf]
    %v1184 = vld [vmem:[#allocation8 + $0x40] sm:$0xf]
    %v1185 = vld [vmem:[#allocation8 + $0x44] sm:$0xf]
    %v1186 = vld [vmem:[#allocation8 + $0x48] sm:$0xf]
    %v1187 = vld [vmem:[#allocation8 + $0x4c] sm:$0xf]
    %v1188 = vld [vmem:[#allocation8 + $0x50] sm:$0xf]
    %v1189 = vld [vmem:[#allocation8 + $0x54] sm:$0xf]
    %v1190 = vld [vmem:[#allocation8 + $0x58] sm:$0xf]
    %v1191 = vld [vmem:[#allocation8 + $0x5c] sm:$0xf]
    %v1192 = vld [vmem:[#allocation8 + $0x60] sm:$0xf]
    %v1193 = vld [vmem:[#allocation8 + $0x64] sm:$0xf]
    %v1194 = vld [vmem:[#allocation8 + $0x68] sm:$0xf]
    %v1195 = vld [vmem:[#allocation8 + $0x6c] sm:$0xf]
    %v1196 = vld [vmem:[#allocation8 + $0x70] sm:$0xf]
    %v1197 = vld [vmem:[#allocation8 + $0x74] sm:$0xf]
    %v1198 = vld [vmem:[#allocation8 + $0x78] sm:$0xf]
    %v1199 = vld [vmem:[#allocation8 + $0x7c] sm:$0xf]
    %v1200 = vld [vmem:[%s6] sm:$0x1]
    %v1202 = vlaneseq
    %v1203 = vshrl.u32 %v1202, 7
    %v1204 = vsub.s32 0, %v1203
    %v1205 = vrot.slane %v1200, %v1204
    %v1239 = vunpack.c.l.b16 %v1168
    %v1240 = vunpack.c.l.b16 %v1169
    %v1241 = vunpack.c.l.b16 %v1170
    %v1242 = vunpack.c.l.b16 %v1171
    %v1243 = vunpack.c.l.b16 %v1172
    %v1244 = vunpack.c.l.b16 %v1173
    %v1245 = vunpack.c.l.b16 %v1174
    %v1246 = vunpack.c.l.b16 %v1175
    %v1247 = vunpack.c.l.b16 %v1176
    %v1248 = vunpack.c.l.b16 %v1177
    %v1249 = vunpack.c.l.b16 %v1178
    %v1250 = vunpack.c.l.b16 %v1179
    %v1251 = vunpack.c.l.b16 %v1180
    %v1252 = vunpack.c.l.b16 %v1181
    %v1253 = vunpack.c.l.b16 %v1182
    %v1254 = vunpack.c.l.b16 %v1183
    %v1255 = vunpack.c.l.b16 %v1184
    %v1256 = vunpack.c.l.b16 %v1185
    %v1257 = vunpack.c.l.b16 %v1186
    %v1258 = vunpack.c.l.b16 %v1187
    %v1259 = vunpack.c.l.b16 %v1188
    %v1260 = vunpack.c.l.b16 %v1189
    %v1261 = vunpack.c.l.b16 %v1190
    %v1262 = vunpack.c.l.b16 %v1191
    %v1263 = vunpack.c.l.b16 %v1192
    %v1264 = vunpack.c.l.b16 %v1193
    %v1265 = vunpack.c.l.b16 %v1194
    %v1266 = vunpack.c.l.b16 %v1195
    %v1267 = vunpack.c.l.b16 %v1196
    %v1268 = vunpack.c.l.b16 %v1197
    %v1269 = vunpack.c.l.b16 %v1198
    %v1270 = vunpack.c.l.b16 %v1199
    %v1271 = vpack.c.b16 %v1240, %v1239
    %v1272 = vpack.c.b16 %v1242, %v1241
    %v1273 = vpack.c.b16 %v1244, %v1243
    %v1274 = vpack.c.b16 %v1246, %v1245
    %v1275 = vpack.c.b16 %v1248, %v1247
    %v1276 = vpack.c.b16 %v1250, %v1249
    %v1277 = vpack.c.b16 %v1252, %v1251
    %v1278 = vpack.c.b16 %v1254, %v1253
    %v1279 = vpack.c.b16 %v1256, %v1255
    %v1280 = vpack.c.b16 %v1258, %v1257
    %v1281 = vpack.c.b16 %v1260, %v1259
    %v1282 = vpack.c.b16 %v1262, %v1261
    %v1283 = vpack.c.b16 %v1264, %v1263
    %v1284 = vpack.c.b16 %v1266, %v1265
    %v1285 = vpack.c.b16 %v1268, %v1267
    %v1286 = vpack.c.b16 %v1270, %v1269
    %1303 = vmatprep.subr.bf16.mxu0 0
    %1304 = vmatpush1.bf16.msra.mxu0 %v1271
    %1305 = vmatprep.subr.bf16.mxu0 0
    %1306 = vmatpush1.bf16.msra.mxu0 %v1272
    %1307 = vmatprep.subr.bf16.mxu0 0
    %1308 = vmatpush1.bf16.msra.mxu0 %v1273
    %1309 = vmatprep.subr.bf16.mxu0 0
    %1310 = vmatpush1.bf16.msra.mxu0 %v1274
    %1311 = vmatprep.subr.bf16.mxu0 0
    %1312 = vmatpush1.bf16.msra.mxu0 %v1275
    %1313 = vmatprep.subr.bf16.mxu0 0
    %1314 = vmatpush1.bf16.msra.mxu0 %v1276
    %1315 = vmatprep.subr.bf16.mxu0 0
    %1316 = vmatpush1.bf16.msra.mxu0 %v1277
    %1317 = vmatprep.subr.bf16.mxu0 0
    %1318 = vmatpush1.bf16.msra.mxu0 %v1278
    %1319 = vmatprep.subr.bf16.mxu0 0
    %1320 = vmatpush1.bf16.msra.mxu0 %v1279
    %1321 = vmatprep.subr.bf16.mxu0 0
    %1322 = vmatpush1.bf16.msra.mxu0 %v1280
    %1323 = vmatprep.subr.bf16.mxu0 0
    %1324 = vmatpush1.bf16.msra.mxu0 %v1281
    %1325 = vmatprep.subr.bf16.mxu0 0
    %1326 = vmatpush1.bf16.msra.mxu0 %v1282
    %1327 = vmatprep.subr.bf16.mxu0 0
    %1328 = vmatpush1.bf16.msra.mxu0 %v1283
    %1329 = vmatprep.subr.bf16.mxu0 0
    %1330 = vmatpush1.bf16.msra.mxu0 %v1284
    %1331 = vmatprep.subr.bf16.mxu0 0
    %1332 = vmatpush1.bf16.msra.mxu0 %v1285
    %1333 = vmatprep.subr.bf16.mxu0 0
    %1334 = vmatpush1.bf16.msra.mxu0 %v1286
    %1335 = vmatprep.mubr.bf16.mxu0 %v1167
    %1336 = vmatmul.mubr.bf16.gmra.mrb[0].mxu0 %v1166
    %v1337 = vpop.f32.mrb[0].mxu0
    %v1338 = vadd.f32 %v1205, %v1337
    %v1339 = vpop.f32.mrb[0].mxu0
    %v1340 = vpop.f32.mrb[0].mxu0
    %v1341 = vpop.f32.mrb[0].mxu0
    %1342 = vdwg.mxu0
    %v1343 = vtanh.pop %v1338
    %1344 = vst [vmem:[#allocation10] sm:$0xff] %v1343
    // Predicated region
    $region46: #{tpu_custom_call.1} parent=1 // pred_check
      _
    $region47: #{tpu_custom_call.1} parent=1 // pred_check_branch
      %1346 = sbr.rel (0) target = $region49
    $region48: #{tpu_custom_call.1} parent=1 // pred_region
      %s1348 = ssub.s32 128, 128
      %1349 = vsyncadd [#allocation4], %s1348
      %s1351 = sshll.u32 [#allocation10], 4
      %s1352 = int_to_ptr.vmem [resolvable:$true] %s1351
      %1354 = dma.vmem_to_hbm [thread:$0]  %s1352, 128, %s7, [#allocation4]
    $region49: #{tpu_custom_call.1} parent=1 // pred_fallthru
      _
    // Predicated region
    $region50: #{tpu_custom_call.1} parent=1 // pred_check
      _
    $region51: #{tpu_custom_call.1} parent=1 // pred_check_branch
      %1356 = sbr.rel (0) target = $region53
    $region52: #{tpu_custom_call.1} parent=1 // pred_region
      %1357 = dma.done [#allocation4], 128
    $region53: #{tpu_custom_call.1} parent=1 // pred_fallthru
      _
    %1358 = vsyncpa [#allocation3], 1
    %1359 = vsyncpa [#allocation6], 1
    %1360 = vsyncpa [#allocation9], 1
    %1361 = vsyncpa [#allocation4], 1

</llo_original>
